<compile_context>
chip_gen: v6e
topology: v6e:2x2x1
jax: 0.10.0
libtpu: 0.0.40
codegen_flags: <defaults>
</compile_context>

<pallas_src>
import jax
import jax.numpy as jnp
from jax.experimental import pallas as pl
from jax.experimental.pallas import tpu as pltpu


def attention_kernel(x_ref, w_ref, b_ref, o_ref):
    # x_ref: (TB, S, F) VMEM tile of the input
    # w_ref: (1, F)     VMEM lane-dense weight row
    # b_ref: (1, 1)     SMEM scalar bias
    # o_ref: (TB, F)    VMEM output tile
    x = x_ref[...]                                   # (TB, S, F) f32
    w = w_ref[...].reshape(1, 1, x.shape[-1])        # (1, 1, F)
    bias = b_ref[0, 0]                               # scalar (SMEM)

    # Linear(F -> 1) on the VPU: broadcast multiply + cross-lane reduce.
    scores = jnp.sum(x * w, axis=-1, keepdims=True) + bias          # (TB, S, 1)

    # Softmax over the step axis (axis=1), kept unnormalized until the end.
    m = jnp.max(scores, axis=1, keepdims=True)                      # (TB, 1, 1)
    e = jnp.exp(scores - m)                                         # (TB, S, 1)
    denom = jnp.sum(e, axis=1)                                      # (TB, 1)

    # Weighted sum over steps, then one reciprocal (EUP) to normalize.
    num = jnp.sum(x * e, axis=1)                                    # (TB, F)
    inv = pl.reciprocal(denom, approx=True)                         # (TB, 1)
    o_ref[...] = (num * inv).astype(o_ref.dtype)


def _round_up(x, m):
    return (x + m - 1) // m * m


def _choose_tb(B, S, F, itemsize, target_tile_bytes):
    # VMEM tiles pad the last two dims to (8, 128); with F=32 the lane axis is
    # 75% padding, so budget against the padded footprint.
    s_pad = _round_up(S, 8)
    f_pad = _round_up(F, 128)
    per_batch = s_pad * f_pad * itemsize
    tb = max(1, target_tile_bytes // per_batch)
    tb = min(tb, B)
    if tb >= 8:
        tb = (tb // 8) * 8      # keep the output block sublane-dense
    return int(tb)


def attention_forward(x, w, b, *, tb=None, target_tile_bytes=4 * 1024 * 1024):
    """x: (B, S, F); w: (F, 1) Linear weight (transposed); b: (1, 1) bias -> (B, F)."""
    B, S, F = x.shape
    itemsize = jnp.dtype(x.dtype).itemsize
    w_row = jnp.asarray(w, x.dtype).reshape(1, F)     # lane-dense weight row
    b_val = jnp.asarray(b, x.dtype).reshape(1, 1)     # SMEM scalar

    if tb is None:
        tb = _choose_tb(B, S, F, itemsize, target_tile_bytes)
    tb = max(1, min(int(tb), B))

    # Pad the batch so B % TB == 0 (zero rows are NaN-safe: uniform softmax * 0 = 0).
    b_pad = _round_up(B, tb)
    if b_pad != B:
        x = jnp.pad(x, ((0, b_pad - B), (0, 0), (0, 0)))
    grid = (b_pad // tb,)

    # Scoped-VMEM budget: double-buffered x tile + elementwise temporaries
    # (x*w, x*e, exp) + output, with slack; capped under v7x's 64 MiB physical.
    s_pad, f_pad = _round_up(S, 8), _round_up(F, 128)
    x_tile = tb * s_pad * f_pad * itemsize
    o_tile = _round_up(tb, 8) * f_pad * itemsize
    vmem_limit = 2 * x_tile + 3 * x_tile + 2 * o_tile + (4 << 20)
    vmem_limit = int(max(16 << 20, min(vmem_limit, 48 << 20)))

    out = pl.pallas_call(
        attention_kernel,
        out_shape=jax.ShapeDtypeStruct((b_pad, F), x.dtype),
        grid_spec=pltpu.PrefetchScalarGridSpec(
            num_scalar_prefetch=0,
            grid=grid,
            in_specs=[
                pl.BlockSpec((tb, S, F), lambda i: (i, 0, 0)),          # x tile
                pl.BlockSpec((1, F), lambda i: (0, 0)),                 # weight row
                pl.BlockSpec(memory_space=pltpu.MemorySpace.SMEM),      # bias scalar
            ],
            out_specs=pl.BlockSpec((tb, F), lambda i: (i, 0)),
        ),
        compiler_params=pltpu.CompilerParams(
            dimension_semantics=("parallel",),
            vmem_limit_bytes=vmem_limit,
        ),
        cost_estimate=pl.CostEstimate(
            flops=4 * b_pad * S * F,
            transcendentals=b_pad * S,
            bytes_accessed=(b_pad * S * F + b_pad * F + F + 1) * itemsize,
        ),
    )(x, w_row, b_val)
    return out[:B]


def attention_reference(x, w, b):
    scores = jnp.einsum("bsf,fo->bso", x, w) + b[0, 0]   # (B, S, 1)
    a = jax.nn.softmax(scores, axis=1)
    return jnp.sum(x * a, axis=1)                        # (B, F)


if __name__ == "__main__":
    B, S, F = 2, 8, 32  # batch, step_dim, feature_dim

    key = jax.random.PRNGKey(0)
    kx, kw, kb = jax.random.split(key, 3)
    x = jax.random.normal(kx, (B, S, F), dtype=jnp.float32)
    # deterministic synthetic params for nn.Linear(feature_dim, 1, bias=True)
    w = jax.random.normal(kw, (F, 1), dtype=jnp.float32) * (1.0 / jnp.sqrt(F))
    b = jax.random.normal(kb, (1, 1), dtype=jnp.float32) * 0.01

    out = jax.block_until_ready(attention_forward(x, w, b))
    ref = attention_reference(x, w, b)
    assert out.shape == (B, F)
    assert jnp.allclose(out, ref, atol=2e-3, rtol=2e-3), "mismatch vs reference"

    # Also exercise the batch-tiled + padded path (B % TB != 0, multi-block grid).
    B2, S2 = 20, 16
    x2 = jax.random.normal(kx, (B2, S2, F), dtype=jnp.float32)
    out2 = jax.block_until_ready(attention_forward(x2, w, b, tb=8))
    ref2 = attention_reference(x2, w, b)
    assert out2.shape == (B2, F)
    assert jnp.allclose(out2, ref2, atol=2e-3, rtol=2e-3), "tiled-path mismatch"

    print("KERNEL_OK")
</pallas_src>

<mosaic_0001>
module attributes {stable_mosaic.version = 11 : i64} {
  func.func @attention_kernel(%arg0: i32, %arg1: memref<2x8x32xf32, #tpu.memory_space<vmem>>, %arg2: memref<1x32xf32, #tpu.memory_space<vmem>>, %arg3: memref<1x1xf32, #tpu.memory_space<smem>>, %arg4: memref<2x32xf32, #tpu.memory_space<vmem>>) attributes {dimension_semantics = [#tpu.dimension_semantics<parallel>], iteration_bounds = array<i64: 1>, scalar_prefetch = 0 : i64, scratch_operands = 0 : i64, tpu.core_type = #tpu.core_type<tc>, window_params = [{transform_indices = @transform_0, window_bounds = array<i64: 2, 8, 32>}, {pipeline_mode = #tpu.pipeline_mode<synchronous>, transform_indices = @transform_1, window_bounds = array<i64: 1, 32>}, {transform_indices = @transform_2, window_bounds = array<i64: 1, 1>}, {transform_indices = @transform_3, window_bounds = array<i64: 2, 32>}]} {
    %c0 = arith.constant 0 : index
    %c0_0 = arith.constant 0 : index
    %c0_1 = arith.constant 0 : index
    %0 = vector.load %arg1[%c0, %c0_0, %c0_1] : memref<2x8x32xf32, #tpu.memory_space<vmem>>, vector<2x8x32xf32>
    %c0_2 = arith.constant 0 : index
    %c0_3 = arith.constant 0 : index
    %1 = vector.load %arg2[%c0_2, %c0_3] : memref<1x32xf32, #tpu.memory_space<vmem>>, vector<1x32xf32>
    %2 = vector.shape_cast %1 : vector<1x32xf32> to vector<1x1x32xf32>
    %c0_4 = arith.constant 0 : index
    %c0_5 = arith.constant 0 : index
    %3 = memref.load %arg3[%c0_4, %c0_5] : memref<1x1xf32, #tpu.memory_space<smem>>
    %4 = vector.broadcast %2 : vector<1x1x32xf32> to vector<2x8x32xf32>
    %5 = arith.mulf %0, %4 : vector<2x8x32xf32>
    %cst = arith.constant dense<0.000000e+00> : vector<2x8xf32>
    %6 = vector.multi_reduction <add>, %5, %cst [2] : vector<2x8x32xf32> to vector<2x8xf32>
    %7 = vector.shape_cast %6 : vector<2x8xf32> to vector<2x8x1xf32>
    %8 = vector.broadcast %3 : f32 to vector<2x8x1xf32>
    %9 = arith.addf %7, %8 : vector<2x8x1xf32>
    %cst_6 = arith.constant dense<0xFF800000> : vector<2x1xf32>
    %10 = vector.multi_reduction <maximumf>, %9, %cst_6 [1] : vector<2x8x1xf32> to vector<2x1xf32>
    %11 = vector.shape_cast %10 : vector<2x1xf32> to vector<2x1x1xf32>
    %12 = vector.broadcast %11 : vector<2x1x1xf32> to vector<2x8x1xf32>
    %13 = arith.subf %9, %12 : vector<2x8x1xf32>
    %14 = math.exp %13 : vector<2x8x1xf32>
    %cst_7 = arith.constant dense<0.000000e+00> : vector<2x1xf32>
    %15 = vector.multi_reduction <add>, %14, %cst_7 [1] : vector<2x8x1xf32> to vector<2x1xf32>
    %16 = vector.broadcast %14 : vector<2x8x1xf32> to vector<2x8x32xf32>
    %17 = arith.mulf %0, %16 : vector<2x8x32xf32>
    %cst_8 = arith.constant dense<0.000000e+00> : vector<2x32xf32>
    %18 = vector.multi_reduction <add>, %17, %cst_8 [1] : vector<2x8x32xf32> to vector<2x32xf32>
    %19 = tpu.reciprocal %15 {approx = true} : vector<2x1xf32> -> vector<2x1xf32>
    %20 = vector.broadcast %19 : vector<2x1xf32> to vector<2x32xf32>
    %21 = arith.mulf %18, %20 : vector<2x32xf32>
    %c0_9 = arith.constant 0 : index
    %c0_10 = arith.constant 0 : index
    %22 = vector.load %arg4[%c0_9, %c0_10] : memref<2x32xf32, #tpu.memory_space<vmem>>, vector<2x32xf32>
    tpu.vector_store %arg4[%c0_9, %c0_10], %21 {strides = array<i32>} : memref<2x32xf32, #tpu.memory_space<vmem>>, vector<2x32xf32>,
    return
  }
  func.func @transform_0(%arg0: i32) -> (i32, i32, i32) {
    %c0_i32 = arith.constant 0 : i32
    %c0_i32_0 = arith.constant 0 : i32
    %c0_i32_1 = arith.constant 0 : i32
    return %arg0, %c0_i32, %c0_i32_0 : i32, i32, i32
  }
  func.func @transform_1(%arg0: i32) -> (i32, i32) {
    %c0_i32 = arith.constant 0 : i32
    %c0_i32_0 = arith.constant 0 : i32
    %c0_i32_1 = arith.constant 0 : i32
    return %c0_i32, %c0_i32_0 : i32, i32
  }
  func.func @transform_2(%arg0: i32) -> (i32, i32) {
    %c0_i32 = arith.constant 0 : i32
    %c0_i32_0 = arith.constant 0 : i32
    %c0_i32_1 = arith.constant 0 : i32
    return %c0_i32, %c0_i32_0 : i32, i32
  }
  func.func @transform_3(%arg0: i32) -> (i32, i32) {
    %c0_i32 = arith.constant 0 : i32
    %c0_i32_0 = arith.constant 0 : i32
    return %arg0, %c0_i32 : i32, i32
  }
}

</mosaic_0001>

<llo_original>
// kernel: tpu_custom_call.1
$region0: #{tpu_custom_call.1}
  #allocation0 [shape = 'u32[]', space=smem, size = 0x4, offset = 0x4, fixed_abs, tag = 'smem constant byte address 0x4 - core index']
  #allocation1 [shape = 'u32[144,128]{1,0:T(1,128)}', space=vmem, size = 0x12000, scoped, tag = 'internal scratch']
  #allocation2 [shape = 'f32[1,1]{1,0:T(1,128)S(6)}', space=smem, size = 0x200, scoped, tag = 'scoped memory for tpu_custom_call.1']
  %s0 = inlined_call_operand.hbm [shape: f32[2,8,32], index: 0, kind: input, shape index: {}]
  %s1 = inlined_call_operand.vmem [shape: f32[1,32], index: 1, kind: input, shape index: {}]
  %s2 = inlined_call_operand.<no memory space> [shape: f32[1,1], index: 2, kind: input, shape index: {}]
  %s3 = inlined_call_operand.hbm [shape: f32[2,32], index: 3, kind: output, shape index: {}]
  %s4 = sld [smem:[#allocation0]]
  $region26: #{tpu_custom_call.1} parent=0
    _
  %s6 = ssub.s32 1, %s4
  %s7 = scalar_select 0, %s6, %s4
  %8 = sst [smem:[#allocation2]] %s2
  $region1: #{tpu_custom_call.1} parent=0
    #allocation3 [shape = 'u8[8192]{0}', space=vmem, size = 0x2000, scoped, tag = 'input window, operand 0, single buffered']
    #allocation4 [shape = 's32[1]{0}', space=sflag, size = 0x4, scoped, tag = 'scoped memory for tpu_custom_call.1']
    #allocation5 [shape = 's32[1]{0}', space=sflag, size = 0x4, scoped, tag = 'scoped memory for tpu_custom_call.1']
    #allocation6 [shape = 'u8[1024]{0}', space=vmem, size = 0x400, scoped, tag = 'output window, operand 0, single buffered']
    %9 = vsyncpa [#allocation4], 0
    %10 = vsyncpa [#allocation5], 0
    // Predicated region
    $region2: #{tpu_custom_call.1} parent=1 // pred_check
      _
    $region3: #{tpu_custom_call.1} parent=1 // pred_check_branch
      %12 = sbr.rel (0) target = $region5
    $region4: #{tpu_custom_call.1} parent=1 // pred_region
      %s14 = ssub.s32 256, 256
      %15 = vsyncadd [#allocation4], %s14
      %s16 = sshll.u32 [#allocation3], 4
      %s17 = int_to_ptr.vmem [resolvable:$true] %s16
      %22 = dma.hbm_to_vmem [thread:$0]  %s0, 256, %s17, [#allocation4], 128, 128, 8
    $region5: #{tpu_custom_call.1} parent=1 // pred_fallthru
      _
    // Predicated region
    $region6: #{tpu_custom_call.1} parent=1 // pred_check
      _
    $region7: #{tpu_custom_call.1} parent=1 // pred_check_branch
      %24 = sbr.rel (0) target = $region9
    $region8: #{tpu_custom_call.1} parent=1 // pred_region
      _
    $region9: #{tpu_custom_call.1} parent=1 // pred_fallthru
      _
    // Predicated region
    $region10: #{tpu_custom_call.1} parent=1 // pred_check
      _
    $region11: #{tpu_custom_call.1} parent=1 // pred_check_branch
      %26 = sbr.rel (0) target = $region13
    $region12: #{tpu_custom_call.1} parent=1 // pred_region
      _
    $region13: #{tpu_custom_call.1} parent=1 // pred_fallthru
      _
    // Predicated region
    $region14: #{tpu_custom_call.1} parent=1 // pred_check
      _
    $region15: #{tpu_custom_call.1} parent=1 // pred_check_branch
      %28 = sbr.rel (0) target = $region17
    $region16: #{tpu_custom_call.1} parent=1 // pred_region
      %29 = dma.done [#allocation4], 256
    $region17: #{tpu_custom_call.1} parent=1 // pred_fallthru
      _
    %v30 = vld [vmem:[#allocation3] sm:$0xff]
    %v31 = vld [vmem:[#allocation3 + $0x8] sm:$0xff]
    %v32 = vld [vmem:[%s1] sm:$0x1]
    %s33 = sld [smem:[#allocation2]]
    %v35 = vlaneseq
    %v36 = vshrl.u32 %v35, 7
    %v37 = vsub.s32 0, %v36
    %v38 = vrot.slane %v32, %v37
    %v40 = vmul.f32 %v30, %v38
    %v41 = vmul.f32 %v31, %v38
    %vm42 = vcmask 261120
    %v43 = vsel %vm42, %v40, 0.0
    %44 = vadd.xlane.f32.xlu0 %v43
    %v45 = vpop.xlane.xlu0 %44
    %v46 = vsel %vm42, %v41, 0.0
    %47 = vadd.xlane.f32.xlu0 %v46
    %v48 = vpop.xlane.xlu0 %47
    %v49 = vstv %s33
    %v50 = vadd.f32 %v45, %v49
    %v51 = vadd.f32 %v48, %v49
    %v52 = vrot.slane %v50, 4
    %v53 = vmax.f32 %v50, %v52
    %v54 = vrot.slane %v53, 2
    %v55 = vmax.f32 %v53, %v54
    %v56 = vrot.slane %v55, 1
    %v57 = vmax.f32 %v55, %v56
    %v58 = vrot.slane %v51, 4
    %v59 = vmax.f32 %v51, %v58
    %v60 = vrot.slane %v59, 2
    %v61 = vmax.f32 %v59, %v60
    %v62 = vrot.slane %v61, 1
    %v63 = vmax.f32 %v61, %v62
    %v64 = vsub.f32 %v50, %v57
    %v65 = vsub.f32 %v51, %v63
    %v66 = vmul.f32 %v64, 1.442695
    %v67 = vpow.pop %v66
    %v68 = vmul.f32 %v65, 1.442695
    %v69 = vpow.pop %v68
    %v70 = vrot.slane %v67, 4
    %v71 = vadd.f32 %v67, %v70
    %v72 = vrot.slane %v71, 2
    %v73 = vadd.f32 %v71, %v72
    %v74 = vrot.slane %v73, 1
    %v75 = vadd.f32 %v73, %v74
    %v76 = vrot.slane %v69, 4
    %v77 = vadd.f32 %v69, %v76
    %v78 = vrot.slane %v77, 2
    %v79 = vadd.f32 %v77, %v78
    %v80 = vrot.slane %v79, 1
    %v81 = vadd.f32 %v79, %v80
    %v82 = vmul.f32 %v30, %v67
    %v83 = vmul.f32 %v31, %v69
    %v84 = vsel %vm42, %v82, 0.0
    %v85 = vrot.slane %v84, 4
    %v86 = vadd.f32 %v84, %v85
    %v87 = vrot.slane %v86, 2
    %v88 = vadd.f32 %v86, %v87
    %v89 = vrot.slane %v88, 1
    %v90 = vadd.f32 %v88, %v89
    %v91 = vsel %vm42, %v83, 0.0
    %v92 = vrot.slane %v91, 4
    %v93 = vadd.f32 %v91, %v92
    %v94 = vrot.slane %v93, 2
    %v95 = vadd.f32 %v93, %v94
    %v96 = vrot.slane %v95, 1
    %v97 = vadd.f32 %v95, %v96
    %v98 = vrcp.pop %v75
    %v99 = vrcp.pop %v81
    %v100 = vmul.f32 %v90, %v98
    %v101 = vmul.f32 %v97, %v99
    %vm104 = vcmask 1041409
    %v105 = vsel %vm104, %v101, %v100
    %vm107 = vcmask 254976
    %108 = vst.msk [vmem:[#allocation6] sm:$0x3] %vm107, %v105
    // Predicated region
    $region18: #{tpu_custom_call.1} parent=1 // pred_check
      _
    $region19: #{tpu_custom_call.1} parent=1 // pred_check_branch
      %110 = sbr.rel (0) target = $region21
    $region20: #{tpu_custom_call.1} parent=1 // pred_region
      %s112 = ssub.s32 32, 32
      %113 = vsyncadd [#allocation5], %s112
      %s115 = sshll.u32 [#allocation6], 4
      %s116 = int_to_ptr.vmem [resolvable:$true] %s115
      %118 = dma.vmem_to_hbm [thread:$0]  %s116, 32, %s3, [#allocation5]
    $region21: #{tpu_custom_call.1} parent=1 // pred_fallthru
      _
    // Predicated region
    $region22: #{tpu_custom_call.1} parent=1 // pred_check
      _
    $region23: #{tpu_custom_call.1} parent=1 // pred_check_branch
      %120 = sbr.rel (0) target = $region25
    $region24: #{tpu_custom_call.1} parent=1 // pred_region
      %121 = dma.done [#allocation5], 32
    $region25: #{tpu_custom_call.1} parent=1 // pred_fallthru
      _
    %122 = vsyncpa [#allocation4], 1
    %123 = vsyncpa [#allocation5], 1

</llo_original>
